<compile_context>
chip_gen: v6e
topology: v6e:2x2x1
jax: 0.10.0
libtpu: 0.0.40
codegen_flags: <defaults>
</compile_context>

<pallas_src>
import functools
import math

import jax
import jax.numpy as jnp
from jax.experimental import pallas as pl
from jax.experimental.pallas import tpu as pltpu


# Safe on every generation (v5e/v6e 128 MiB physical, v7x 64 MiB physical) and
# well above the 16–32 MiB scoped defaults so larger tiles actually take effect.
_VMEM_LIMIT_BYTES = 48 * 1024 * 1024


# -----------------------------------------------------------------------------
# Host-side weight preparation
# -----------------------------------------------------------------------------
def _perm_gates(m):
    """Reorder the PyTorch gate axis [i, f, g, o] -> [i, f, o, g] so that the
    three sigmoid gates are contiguous (one wide EUP push in the kernel)."""
    h = m.shape[0] // 4
    return jnp.concatenate([m[:2 * h], m[3 * h:], m[2 * h:3 * h]], axis=0)


def _fused_whh(w_hh_fwd, w_hh_bwd, hidden):
    """Direction-block-diagonal recurrent weight (2H, 8H) in bf16.

    Rows 0:H (forward h) feed columns 0:4H (forward gates, [i,f,o,g]);
    rows H:2H (backward h) feed columns 4H:8H (backward gates)."""
    wf = _perm_gates(jnp.asarray(w_hh_fwd, jnp.float32)).T      # (H, 4H)
    wb = _perm_gates(jnp.asarray(w_hh_bwd, jnp.float32)).T      # (H, 4H)
    z = jnp.zeros_like(wf)
    top = jnp.concatenate([wf, z], axis=1)
    bot = jnp.concatenate([z, wb], axis=1)
    return jnp.concatenate([top, bot], axis=0).astype(jnp.bfloat16)   # (2H, 8H)


def _pick_tile(dim, cap, quantum):
    """Largest tile <= cap that is either the full dim or a multiple-of-quantum
    divisor of dim (keeps every block (8,128)-legal)."""
    if dim <= cap:
        return dim
    t = (cap // quantum) * quantum
    while t >= quantum:
        if dim % t == 0:
            return t
        t -= quantum
    return dim


# -----------------------------------------------------------------------------
# Pallas kernels
# -----------------------------------------------------------------------------
def _proj_kernel(*refs, n_terms):
    """out = sum_i x_i @ w_i + bias  (bf16 operands, f32 accumulate)."""
    out_ref, b_ref = refs[-1], refs[-2]
    acc = jnp.dot(refs[0][...], refs[1][...], preferred_element_type=jnp.float32)
    for t in range(1, n_terms):
        acc = acc + jnp.dot(refs[2 * t][...], refs[2 * t + 1][...],
                            preferred_element_type=jnp.float32)
    out_ref[...] = (acc + b_ref[...]).astype(out_ref.dtype)


def _bilstm_fused_kernel(len_ref, gxf_ref, gxb_ref, whh_ref,
                         hf_ref, hb_ref, clast_ref,
                         h_scr, c_scr, *, hidden, chunk):
    """Both directions of one bidirectional LSTM layer, fused per timestep.

    grid = (nchunks,) over time chunks ("arbitrary": carried recurrence).
    Per grid step the forward direction consumes chunk c and the backward
    direction consumes chunk nchunks-1-c (in reversed in-chunk order) — no
    jnp.flip anywhere.  The input projection x @ W_ih^T + bias is precomputed,
    so each timestep costs ONE fused (B,2H)@(2H,8H) MXU push plus gating.
    """
    H = hidden
    c = pl.program_id(0)
    nchunks = pl.num_programs(0)

    @pl.when(c == 0)
    def _():
        h_scr[...] = jnp.zeros_like(h_scr)
        c_scr[...] = jnp.zeros_like(c_scr)

    lengths = len_ref[...]                 # (B, 1) int32
    whh = whh_ref[...]                     # (2H, 8H) bf16, resident across grid

    base_f = c * chunk                     # original time of fwd chunk start
    base_b = (nchunks - 1 - c) * chunk     # original time of bwd chunk start

    h2 = h_scr[...]                        # (B, 2H) f32 : [h_fwd | h_bwd]
    cf = c_scr[:, :H]
    cb = c_scr[:, H:]

    for k in range(chunk):                 # static unroll over the K steps
        kb = chunk - 1 - k                 # backward reads its chunk reversed
        t_f = base_f + k                   # original time indices
        t_b = base_b + kb

        rec = jnp.dot(h2.astype(jnp.bfloat16), whh,
                      preferred_element_type=jnp.float32)           # (B, 8H)
        g_f = gxf_ref[:, k, :].astype(jnp.float32) + rec[:, :4 * H]
        g_b = gxb_ref[:, kb, :].astype(jnp.float32) + rec[:, 4 * H:]

        # gate columns per direction: [i | f | o | g] -> 1 wide sigmoid + 1 tanh
        sf = jax.nn.sigmoid(g_f[:, :3 * H])
        sb = jax.nn.sigmoid(g_b[:, :3 * H])
        gf = jnp.tanh(g_f[:, 3 * H:])
        gb = jnp.tanh(g_b[:, 3 * H:])

        cf_new = sf[:, H:2 * H] * cf + sf[:, :H] * gf
        cb_new = sb[:, H:2 * H] * cb + sb[:, :H] * gb
        hf_new = sf[:, 2 * H:] * jnp.tanh(cf_new)
        hb_new = sb[:, 2 * H:] * jnp.tanh(cb_new)

        # packed-sequence semantics: freeze state / zero output at padding
        vf = t_f < lengths                 # (B, 1) bool
        vb = t_b < lengths
        hf_keep = jnp.where(vf, hf_new, h2[:, :H])
        hb_keep = jnp.where(vb, hb_new, h2[:, H:])
        cf = jnp.where(vf, cf_new, cf)
        cb = jnp.where(vb, cb_new, cb)

        # per-step stores into a lane-dense (B, K*H) output block
        hf_ref[:, k * H:(k + 1) * H] = jnp.where(vf, hf_new, 0.0).astype(hf_ref.dtype)
        hb_ref[:, kb * H:(kb + 1) * H] = jnp.where(vb, hb_new, 0.0).astype(hb_ref.dtype)

        h2 = jnp.concatenate([hf_keep, hb_keep], axis=-1)

    c2 = jnp.concatenate([cf, cb], axis=-1)
    h_scr[...] = h2
    c_scr[...] = c2
    clast_ref[...] = c2                    # final value flushed after last chunk


def _linear_tanh_kernel(x_ref, w_ref, b_ref, di_ref, dec_ref):
    """di = x @ W^T + b ; dec = tanh(di)  (bf16 matmul operands, f32 out)."""
    di = jnp.dot(x_ref[...], w_ref[...],
                 preferred_element_type=jnp.float32) + b_ref[...]
    di_ref[...] = di
    dec_ref[...] = jnp.tanh(di)


# -----------------------------------------------------------------------------
# Wrappers around pallas_call
# -----------------------------------------------------------------------------
def input_projection(xw_pairs, bias, out_dtype=jnp.bfloat16,
                     tm_cap=512, tn_cap=512):
    """gates = sum_i x_i @ w_i + bias  as a tiled Pallas GEMM.

    x_i: (M, D_i), w_i: (D_i, G), bias: (G,)  ->  (M, G) in out_dtype (bf16).
    Tiled over (M//tm, N//tn) with the full (small) contraction dim resident
    per tile; operands are bf16 (MXU fast path), accumulation is f32.
    """
    m = xw_pairs[0][0].shape[0]
    g = bias.shape[-1]
    tm = _pick_tile(m, tm_cap, 8)
    tn = _pick_tile(g, tn_cap, 128)
    gm, gn = m // tm, g // tn

    args, in_specs = [], []
    for x, w in xw_pairs:
        kdim = x.shape[1]
        args.append(x.astype(jnp.bfloat16))
        in_specs.append(pl.BlockSpec((tm, kdim), lambda i, j: (i, 0)))
        args.append(w.astype(jnp.bfloat16))
        in_specs.append(pl.BlockSpec((kdim, tn), lambda i, j: (0, j)))
    args.append(bias.reshape(1, g).astype(jnp.float32))
    in_specs.append(pl.BlockSpec((1, tn), lambda i, j: (0, j)))

    kernel = functools.partial(_proj_kernel, n_terms=len(xw_pairs))
    return pl.pallas_call(
        kernel,
        out_shape=jax.ShapeDtypeStruct((m, g), out_dtype),
        grid_spec=pltpu.PrefetchScalarGridSpec(
            num_scalar_prefetch=0,
            grid=(gm, gn),
            in_specs=in_specs,
            out_specs=pl.BlockSpec((tm, tn), lambda i, j: (i, j))),
        compiler_params=pltpu.CompilerParams(
            dimension_semantics=("parallel", "parallel"),
            vmem_limit_bytes=_VMEM_LIMIT_BYTES),
    )(*args)


def bilstm_layer(gates, lengths_col, w_hh_fused, hidden, time_chunk, out_dtype):
    """One bidirectional LSTM layer given precomputed input-gate activations.

    gates       : (B, T, 8H) bf16, columns [0:4H]=forward, [4H:8H]=backward,
                  each direction laid out [i | f | o | g], already containing
                  x @ W_ih^T + (b_ih + b_hh).
    lengths_col : (B, 1) int32 valid lengths.
    w_hh_fused  : (2H, 8H) bf16 direction-block-diagonal recurrent weights.
    returns h_fwd (B, T*H), h_bwd (B, T*H) in out_dtype (reshape to (B,T,H)
    in the caller) and c_last (B, 2H) f32 = [c_fwd_final | c_bwd_final].
    """
    B, T, G = gates.shape
    H = hidden
    assert G == 8 * H
    # each direction's 4H gate columns must fill whole 128-lane tiles
    assert (4 * H) % 128 == 0
    K = min(time_chunk, T)
    assert T % K == 0 and (K % 8 == 0 or K == T)
    nchunks = T // K

    kernel = functools.partial(_bilstm_fused_kernel, hidden=H, chunk=K)
    hf, hb, clast = pl.pallas_call(
        kernel,
        out_shape=(jax.ShapeDtypeStruct((B, T * H), out_dtype),
                   jax.ShapeDtypeStruct((B, T * H), out_dtype),
                   jax.ShapeDtypeStruct((B, 2 * H), jnp.float32)),
        grid_spec=pltpu.PrefetchScalarGridSpec(
            num_scalar_prefetch=0,
            grid=(nchunks,),
            in_specs=[
                # lengths: tiny, resident
                pl.BlockSpec((B, 1), lambda c: (0, 0)),
                # forward gate chunk: time chunk c, columns 0:4H
                pl.BlockSpec((B, K, 4 * H), lambda c: (0, c, 0)),
                # backward gate chunk: time chunk nchunks-1-c, columns 4H:8H
                # (same array passed twice — read-only aliasing, no flip)
                pl.BlockSpec((B, K, 4 * H), lambda c: (0, nchunks - 1 - c, 1)),
                # fused recurrent weights: resident across the grid
                pl.BlockSpec((2 * H, 8 * H), lambda c: (0, 0)),
            ],
            out_specs=(
                pl.BlockSpec((B, K * H), lambda c: (0, c)),
                pl.BlockSpec((B, K * H), lambda c: (0, nchunks - 1 - c)),
                pl.BlockSpec((B, 2 * H), lambda c: (0, 0)),
            ),
            scratch_shapes=[pltpu.VMEM((B, 2 * H), jnp.float32),
                            pltpu.VMEM((B, 2 * H), jnp.float32)],
        ),
        compiler_params=pltpu.CompilerParams(
            dimension_semantics=("arbitrary",),
            vmem_limit_bytes=_VMEM_LIMIT_BYTES),
    )(lengths_col, gates, gates, w_hh_fused)
    return hf, hb, clast


def linear_tanh(x, w, b):
    """dec_initial_state linear + tanh as a tiny single-shot Pallas kernel."""
    B = x.shape[0]
    H = w.shape[0]
    vmem = pl.BlockSpec(memory_space=pltpu.MemorySpace.VMEM)
    di, dec = pl.pallas_call(
        _linear_tanh_kernel,
        out_shape=(jax.ShapeDtypeStruct((B, H), jnp.float32),
                   jax.ShapeDtypeStruct((B, H), jnp.float32)),
        in_specs=[vmem] * 3,
        out_specs=(vmem, vmem),
    )(x.astype(jnp.bfloat16), w.T.astype(jnp.bfloat16),
      b.reshape(1, H).astype(jnp.float32))
    return di, dec


# -----------------------------------------------------------------------------
# Parameter init (deterministic, synthetic — stands in for GloVe checkpoint)
# -----------------------------------------------------------------------------
def init_params(key, vocab_size, emb_size, hidden, pad_idx):
    ks = iter(jax.random.split(key, 32))

    def uni(shape, scale):
        return jax.random.uniform(next(ks), shape, jnp.float32, -scale, scale)

    emb = jax.random.normal(next(ks), (vocab_size, emb_size), jnp.float32) * 0.5
    emb = emb.at[pad_idx].set(0.0)               # padding_idx row is zero

    s = 1.0 / math.sqrt(hidden)

    def lstm_dir(in_size):
        return (uni((4 * hidden, in_size), s),   # w_ih   (PyTorch order i,f,g,o)
                uni((4 * hidden, hidden), s),    # w_hh
                uni((4 * hidden,), s),           # b_ih
                uni((4 * hidden,), s))           # b_hh

    return {
        "embedding": emb,
        "lstm": [
            {"fwd": lstm_dir(emb_size), "bwd": lstm_dir(emb_size)},
            {"fwd": lstm_dir(2 * hidden), "bwd": lstm_dir(2 * hidden)},
        ],
        "dec_w": uni((hidden, 2 * hidden), 1.0 / math.sqrt(2 * hidden)),
        "dec_b": uni((hidden,), 1.0 / math.sqrt(2 * hidden)),
    }


# -----------------------------------------------------------------------------
# Forward pass (mirrors LSTM_Encoder.forward)
# -----------------------------------------------------------------------------
def lstm_encoder_forward(params, sentences, lengths, hidden, time_chunk=8):
    """sentences: (T, B) int32 token ids, lengths: (B,) int32."""
    T, B = sentences.shape
    H = hidden

    # Embedding lookup, batch-major (B, T, E).
    x = jnp.take(params["embedding"], jnp.transpose(sentences), axis=0)
    E = x.shape[-1]

    lengths_col = lengths.astype(jnp.int32).reshape(B, 1)

    # ---- layer 0 -------------------------------------------------------------
    p0f, p0b = params["lstm"][0]["fwd"], params["lstm"][0]["bwd"]
    w0 = jnp.concatenate([_perm_gates(p0f[0]).T, _perm_gates(p0b[0]).T], axis=1)
    b0 = jnp.concatenate([_perm_gates(p0f[2] + p0f[3]),
                          _perm_gates(p0b[2] + p0b[3])])
    gates0 = input_projection([(x.reshape(B * T, E), w0)], b0)
    gates0 = gates0.reshape(B, T, 8 * H)

    whh0 = _fused_whh(p0f[1], p0b[1], H)
    h0f, h0b, clast0 = bilstm_layer(gates0, lengths_col, whh0, H, time_chunk,
                                    out_dtype=jnp.bfloat16)

    # ---- layer 1 -------------------------------------------------------------
    # layer-1 input is [h_fwd | h_bwd]; feed the two halves as separate GEMM
    # terms so their concatenation is never materialised in HBM.
    p1f, p1b = params["lstm"][1]["fwd"], params["lstm"][1]["bwd"]
    wf_t = _perm_gates(p1f[0]).T                                   # (2H, 4H)
    wb_t = _perm_gates(p1b[0]).T
    w1_hf = jnp.concatenate([wf_t[:H], wb_t[:H]], axis=1)          # (H, 8H)
    w1_hb = jnp.concatenate([wf_t[H:], wb_t[H:]], axis=1)          # (H, 8H)
    b1 = jnp.concatenate([_perm_gates(p1f[2] + p1f[3]),
                          _perm_gates(p1b[2] + p1b[3])])
    gates1 = input_projection([(h0f.reshape(B * T, H), w1_hf),
                               (h0b.reshape(B * T, H), w1_hb)], b1)
    gates1 = gates1.reshape(B, T, 8 * H)

    whh1 = _fused_whh(p1f[1], p1b[1], H)
    h1f, h1b, _ = bilstm_layer(gates1, lengths_col, whh1, H, time_chunk,
                               out_dtype=jnp.float32)

    # already batch-major: (B, T, 2H) — only a lane concat, no transpose.
    source_lang = jnp.concatenate([h1f.reshape(B, T, H),
                                   h1b.reshape(B, T, H)], axis=-1)

    # di = Linear(cat([last_cell[0], last_cell[1]], dim=1)); dec = tanh(di)
    # (PyTorch c_n indices 0,1 are LAYER 0 fwd/bwd — clast0 is already [cf|cb])
    di, dec_init_state = linear_tanh(clast0, params["dec_w"], params["dec_b"])

    return source_lang, (dec_init_state, di)


# -----------------------------------------------------------------------------
# Pure-JAX reference (f32) for a loose numerical sanity check
# -----------------------------------------------------------------------------
def _reference_forward(params, sentences, lengths, hidden):
    T, B = sentences.shape
    H = hidden
    x = jnp.take(params["embedding"], sentences.T, axis=0)
    lengths = lengths.astype(jnp.int32)

    def run_dir(inp, p, reverse):
        w_ih, w_hh, b_ih, b_hh = p

        def step(carry, t):
            h, c = carry
            xt = inp[:, t, :]
            gates = xt @ w_ih.T + h @ w_hh.T + b_ih + b_hh
            i = jax.nn.sigmoid(gates[:, :H])
            f = jax.nn.sigmoid(gates[:, H:2 * H])
            g = jnp.tanh(gates[:, 2 * H:3 * H])
            o = jax.nn.sigmoid(gates[:, 3 * H:])
            c_new = f * c + i * g
            h_new = o * jnp.tanh(c_new)
            valid = (t < lengths)[:, None]
            return ((jnp.where(valid, h_new, h), jnp.where(valid, c_new, c)),
                    jnp.where(valid, h_new, 0.0))

        ts = jnp.arange(T)[::-1] if reverse else jnp.arange(T)
        (h, c), outs = jax.lax.scan(step, (jnp.zeros((B, H)), jnp.zeros((B, H))), ts)
        if reverse:
            outs = outs[::-1]
        return jnp.transpose(outs, (1, 0, 2)), h, c

    of, _, cf = run_dir(x, params["lstm"][0]["fwd"], False)
    ob, _, cb = run_dir(x, params["lstm"][0]["bwd"], True)
    inp1 = jnp.concatenate([of, ob], axis=-1)
    o1f, _, _ = run_dir(inp1, params["lstm"][1]["fwd"], False)
    o1b, _, _ = run_dir(inp1, params["lstm"][1]["bwd"], True)
    source = jnp.concatenate([o1f, o1b], axis=-1)
    di = jnp.concatenate([cf, cb], axis=1) @ params["dec_w"].T + params["dec_b"]
    return source, jnp.tanh(di)


# -----------------------------------------------------------------------------
if __name__ == "__main__":
    key = jax.random.PRNGKey(0)
    k_param, k_tok = jax.random.split(key)

    VOCAB = 50
    EMB = 32
    HIDDEN = 32          # 4*HIDDEN = 128 -> one full lane tile per direction
    T, B = 8, 2
    PAD_IDX = 0

    params = init_params(k_param, VOCAB, EMB, HIDDEN, PAD_IDX)

    lengths = jnp.array([8, 5], dtype=jnp.int32)                  # descending
    sentences = jax.random.randint(k_tok, (T, B), 1, VOCAB, dtype=jnp.int32)
    valid = jnp.arange(T)[:, None] < lengths[None, :]
    sentences = jnp.where(valid, sentences, PAD_IDX)

    source_lang, (dec_init_state, di) = lstm_encoder_forward(
        params, sentences, lengths, HIDDEN, time_chunk=8)
    jax.block_until_ready((source_lang, dec_init_state, di))

    assert source_lang.shape == (B, T, 2 * HIDDEN)
    assert dec_init_state.shape == (B, HIDDEN)
    assert di.shape == (B, HIDDEN)
    assert bool(jnp.isfinite(source_lang).all())
    assert bool(jnp.isfinite(dec_init_state).all())
    # padded positions of the shorter sequence must be zero (pad_packed_sequence)
    assert bool(jnp.all(source_lang[1, 5:] == 0.0))

    # loose numerical check against the f32 pure-JAX reference (kernel uses
    # bf16 storage/matmuls, so the tolerance is intentionally coarse)
    ref_src, ref_dec = _reference_forward(params, sentences, lengths, HIDDEN)
    err_src = float(jnp.max(jnp.abs(source_lang - ref_src)))
    err_dec = float(jnp.max(jnp.abs(dec_init_state - ref_dec)))
    assert err_src < 1e-1, f"source_lang mismatch: {err_src}"
    assert err_dec < 1e-1, f"dec_init_state mismatch: {err_dec}"

    print("KERNEL_OK")
</pallas_src>

<mosaic_0001>
module attributes {stable_mosaic.version = 11 : i64} {
  func.func @_proj_kernel(%arg0: i32, %arg1: i32, %arg2: memref<16x32xbf16, #tpu.memory_space<vmem>>, %arg3: memref<32x256xbf16, #tpu.memory_space<vmem>>, %arg4: memref<1x256xf32, #tpu.memory_space<vmem>>, %arg5: memref<16x256xbf16, #tpu.memory_space<vmem>>) attributes {dimension_semantics = [#tpu.dimension_semantics<parallel>, #tpu.dimension_semantics<parallel>], iteration_bounds = array<i64: 1, 1>, scalar_prefetch = 0 : i64, scratch_operands = 0 : i64, tpu.core_type = #tpu.core_type<tc>, window_params = [{transform_indices = @transform_0, window_bounds = array<i64: 16, 32>}, {transform_indices = @transform_1, window_bounds = array<i64: 32, 256>}, {transform_indices = @transform_2, window_bounds = array<i64: 1, 256>}, {transform_indices = @transform_3, window_bounds = array<i64: 16, 256>}]} {
    %c0 = arith.constant 0 : index
    %c0_0 = arith.constant 0 : index
    %0 = vector.load %arg2[%c0, %c0_0] : memref<16x32xbf16, #tpu.memory_space<vmem>>, vector<16x32xbf16>
    %c0_1 = arith.constant 0 : index
    %c0_2 = arith.constant 0 : index
    %1 = vector.load %arg3[%c0_1, %c0_2] : memref<32x256xbf16, #tpu.memory_space<vmem>>, vector<32x256xbf16>
    %cst = arith.constant dense<0.000000e+00> : vector<16x256xf32>
    %2 = tpu.matmul %0, %1, %cst {dimension_numbers = #tpu.dot_dimension_numbers<[1], [0], [0], [1], [0, 0, 1, 1], [], []>} : vector<16x32xbf16>, vector<32x256xbf16>, vector<16x256xf32> -> vector<16x256xf32>
    %c0_3 = arith.constant 0 : index
    %c0_4 = arith.constant 0 : index
    %3 = vector.load %arg4[%c0_3, %c0_4] : memref<1x256xf32, #tpu.memory_space<vmem>>, vector<1x256xf32>
    %4 = vector.broadcast %3 : vector<1x256xf32> to vector<16x256xf32>
    %5 = arith.addf %2, %4 : vector<16x256xf32>
    %6 = arith.truncf %5 : vector<16x256xf32> to vector<16x256xbf16>
    %c0_5 = arith.constant 0 : index
    %c0_6 = arith.constant 0 : index
    %7 = vector.load %arg5[%c0_5, %c0_6] : memref<16x256xbf16, #tpu.memory_space<vmem>>, vector<16x256xbf16>
    tpu.vector_store %arg5[%c0_5, %c0_6], %6 {strides = array<i32>} : memref<16x256xbf16, #tpu.memory_space<vmem>>, vector<16x256xbf16>,
    return
  }
  func.func @transform_0(%arg0: i32, %arg1: i32) -> (i32, i32) {
    %c0_i32 = arith.constant 0 : i32
    %c0_i32_0 = arith.constant 0 : i32
    return %arg0, %c0_i32 : i32, i32
  }
  func.func @transform_1(%arg0: i32, %arg1: i32) -> (i32, i32) {
    %c0_i32 = arith.constant 0 : i32
    %c0_i32_0 = arith.constant 0 : i32
    return %c0_i32, %arg1 : i32, i32
  }
  func.func @transform_2(%arg0: i32, %arg1: i32) -> (i32, i32) {
    %c0_i32 = arith.constant 0 : i32
    %c0_i32_0 = arith.constant 0 : i32
    return %c0_i32, %arg1 : i32, i32
  }
  func.func @transform_3(%arg0: i32, %arg1: i32) -> (i32, i32) {
    %c0_i32 = arith.constant 0 : i32
    return %arg0, %arg1 : i32, i32
  }
}

</mosaic_0001>

<llo_original>
// kernel: tpu_custom_call.1
$region0: #{tpu_custom_call.1}
  #allocation0 [shape = 'u32[]', space=smem, size = 0x4, offset = 0x4, fixed_abs, tag = 'smem constant byte address 0x4 - core index']
  #allocation1 [shape = 'u32[144,128]{1,0:T(1,128)}', space=vmem, size = 0x12000, scoped, tag = 'internal scratch']
  %s0 = inlined_call_operand.hbm [shape: bf16[16,32], index: 0, kind: input, shape index: {}]
  %s1 = inlined_call_operand.hbm [shape: bf16[32,256], index: 1, kind: input, shape index: {}]
  %s2 = inlined_call_operand.vmem [shape: f32[1,256], index: 2, kind: input, shape index: {}]
  %s3 = inlined_call_operand.hbm [shape: bf16[16,256], index: 3, kind: output, shape index: {}]
  %s4 = sld [smem:[#allocation0]]
  $region30: #{tpu_custom_call.1} parent=0
    _
  %s6 = ssub.s32 1, %s4
  %s7 = scalar_select 0, %s6, %s4
  $region1: #{tpu_custom_call.1} parent=0
    #allocation2 [shape = 'u8[4096]{0}', space=vmem, size = 0x1000, scoped, tag = 'input window, operand 0, single buffered']
    #allocation3 [shape = 's32[1]{0}', space=sflag, size = 0x4, scoped, tag = 'scoped memory for tpu_custom_call.1']
    #allocation4 [shape = 's32[1]{0}', space=sflag, size = 0x4, scoped, tag = 'scoped memory for tpu_custom_call.1']
    #allocation5 [shape = 'u8[16384]{0}', space=vmem, size = 0x4000, scoped, tag = 'input window, operand 1, single buffered']
    #allocation6 [shape = 's32[1]{0}', space=sflag, size = 0x4, scoped, tag = 'scoped memory for tpu_custom_call.1']
    #allocation7 [shape = 'u8[8192]{0}', space=vmem, size = 0x2000, scoped, tag = 'output window, operand 0, single buffered']
    %8 = vsyncpa [#allocation3], 0
    %9 = vsyncpa [#allocation6], 0
    %10 = vsyncpa [#allocation4], 0
    // Predicated region
    $region2: #{tpu_custom_call.1} parent=1 // pred_check
      _
    $region3: #{tpu_custom_call.1} parent=1 // pred_check_branch
      %12 = sbr.rel (0) target = $region5
    $region4: #{tpu_custom_call.1} parent=1 // pred_region
      %s14 = ssub.s32 128, 128
      %15 = vsyncadd [#allocation3], %s14
      %s16 = sshll.u32 [#allocation2], 4
      %s17 = int_to_ptr.vmem [resolvable:$true] %s16
      %22 = dma.hbm_to_vmem [thread:$0]  %s0, 128, %s17, [#allocation3], 64, 64, 4
    $region5: #{tpu_custom_call.1} parent=1 // pred_fallthru
      _
    // Predicated region
    $region6: #{tpu_custom_call.1} parent=1 // pred_check
      _
    $region7: #{tpu_custom_call.1} parent=1 // pred_check_branch
      %24 = sbr.rel (0) target = $region9
    $region8: #{tpu_custom_call.1} parent=1 // pred_region
      %s26 = ssub.s32 512, 512
      %27 = vsyncadd [#allocation6], %s26
      %s28 = sshll.u32 [#allocation5], 4
      %s29 = int_to_ptr.vmem [resolvable:$true] %s28
      %34 = dma.hbm_to_vmem [thread:$0]  %s1, 512, %s29, [#allocation6], 128, 128, 8
    $region9: #{tpu_custom_call.1} parent=1 // pred_fallthru
      _
    // Predicated region
    $region10: #{tpu_custom_call.1} parent=1 // pred_check
      _
    $region11: #{tpu_custom_call.1} parent=1 // pred_check_branch
      %36 = sbr.rel (0) target = $region13
    $region12: #{tpu_custom_call.1} parent=1 // pred_region
      _
    $region13: #{tpu_custom_call.1} parent=1 // pred_fallthru
      _
    // Predicated region
    $region14: #{tpu_custom_call.1} parent=1 // pred_check
      _
    $region15: #{tpu_custom_call.1} parent=1 // pred_check_branch
      %38 = sbr.rel (0) target = $region17
    $region16: #{tpu_custom_call.1} parent=1 // pred_region
      %39 = dma.done [#allocation3], 128
    $region17: #{tpu_custom_call.1} parent=1 // pred_fallthru
      _
    // Predicated region
    $region18: #{tpu_custom_call.1} parent=1 // pred_check
      _
    $region19: #{tpu_custom_call.1} parent=1 // pred_check_branch
      %41 = sbr.rel (0) target = $region21
    $region20: #{tpu_custom_call.1} parent=1 // pred_region
      %42 = dma.done [#allocation6], 512
    $region21: #{tpu_custom_call.1} parent=1 // pred_fallthru
      _
    %v44 = vld [vmem:[#allocation2] sm:$0xf]
    %v45 = vld [vmem:[#allocation2 + $0x4] sm:$0xf]
    %v46 = vld [vmem:[#allocation5] sm:$0xff]
    %v47 = vld [vmem:[#allocation5 + $0x8] sm:$0xff]
    %v48 = vld [vmem:[#allocation5 + $0x10] sm:$0xff]
    %v49 = vld [vmem:[#allocation5 + $0x18] sm:$0xff]
    %v50 = vld [vmem:[%s2] sm:$0x3]
    %v52 = vlaneseq
    %v53 = vshrl.u32 %v52, 7
    %v54 = vsub.s32 0, %v53
    %v55 = vrot.slane %v50, %v54
    %v56 = vlaneseq
    %v57 = vshrl.u32 %v56, 7
    %v58 = vsub.s32 1, %v57
    %v59 = vrot.slane %v50, %v58
    %v64 = vunpack.c.l.b16 %v44
    %v65 = vunpack.c.l.b16 %v45
    %v66 = vpack.c.b16 %v65, %v64
    %v71 = vunpack.c.l.b16 %v46
    %v72 = vunpack.c.h.b16 %v46
    %v73 = vunpack.c.l.b16 %v47
    %v74 = vunpack.c.h.b16 %v47
    %v75 = vunpack.c.l.b16 %v48
    %v76 = vunpack.c.h.b16 %v48
    %v77 = vunpack.c.l.b16 %v49
    %v78 = vunpack.c.h.b16 %v49
    %v79 = vpack.c.b16 %v73, %v71
    %v80 = vpack.c.b16 %v74, %v72
    %v81 = vpack.c.b16 %v77, %v75
    %v82 = vpack.c.b16 %v78, %v76
    %vm87 = vcmask 261120
    %v89 = vsel %vm87, %v66, 0
    %91 = vmatprep.subr.bf16.mxu0 0
    %92 = vmatpush1.bf16.msra.mxu0 0
    %93 = vmatprep.subr.bf16.mxu0 0
    %94 = vmatpush1.bf16.msra.mxu0 0
    %95 = vmatprep.subr.bf16.mxu0 0
    %96 = vmatpush1.bf16.msra.mxu0 0
    %97 = vmatprep.subr.bf16.mxu0 0
    %98 = vmatpush1.bf16.msra.mxu0 0
    %99 = vmatprep.subr.bf16.mxu0 0
    %100 = vmatpush1.bf16.msra.mxu0 0
    %101 = vmatprep.subr.bf16.mxu0 0
    %102 = vmatpush1.bf16.msra.mxu0 0
    %103 = vmatprep.subr.bf16.mxu0 %v82
    %104 = vmatpush1.bf16.msra.mxu0 %v81
    %105 = vmatprep.subr.bf16.mxu0 %v80
    %106 = vmatpush1.bf16.msra.mxu0 %v79
    %107 = vmatprep.subr.bf16.mxu0 0
    %108 = vmatpush2.bf16.msra.mxu0 0
    %109 = vmatprep.subr.bf16.mxu0 0
    %110 = vmatpush2.bf16.msra.mxu0 0
    %111 = vmatprep.subr.bf16.mxu0 0
    %112 = vmatpush2.bf16.msra.mxu0 0
    %113 = vmatprep.subr.bf16.mxu0 0
    %114 = vmatpush2.bf16.msra.mxu0 0
    %115 = vmatprep.subr.bf16.mxu0 0
    %116 = vmatpush2.bf16.msra.mxu0 0
    %117 = vmatprep.subr.bf16.mxu0 0
    %118 = vmatpush2.bf16.msra.mxu0 0
    %119 = vmatprep.subr.bf16.mxu0 0
    %120 = vmatpush2.bf16.msra.mxu0 0
    %121 = vmatprep.subr.bf16.mxu0 0
    %122 = vmatpush2.bf16.msra.mxu0 0
    %123 = vmatprep.mubr.bf16.mxu0 0
    %124 = vmatmul.mubr.bf16.gmra.mxu0 %v89
    %v125 = vpop.f32.mrf.mxu0
    %v126 = vadd.f32 %v55, %v125
    %v127 = vpop.f32.mrf.mxu0
    %v128 = vadd.f32 %v59, %v127
    %v129 = vpop.f32.mrf.mxu0
    %v130 = vadd.f32 %v55, %v129
    %v131 = vpop.f32.mrf.mxu0
    %v132 = vadd.f32 %v59, %v131
    %133 = vdwg.mxu0
    %v134 = vpack.c.bf16 %v130, %v126
    %v135 = vpack.c.bf16 %v132, %v128
    %v138 = vunpack.c.l.b16 %v134
    %v139 = vunpack.c.l.b16 %v135
    %v140 = vunpack.c.h.b16 %v134
    %v141 = vunpack.c.h.b16 %v135
    %v142 = vpack.c.b16 %v139, %v138
    %v143 = vpack.c.b16 %v141, %v140
    %146 = vst [vmem:[#allocation7] sm:$0xff] %v142
    %147 = vst [vmem:[#allocation7 + $0x8] sm:$0xff] %v143
    // Predicated region
    $region22: #{tpu_custom_call.1} parent=1 // pred_check
      _
    $region23: #{tpu_custom_call.1} parent=1 // pred_check_branch
      %149 = sbr.rel (0) target = $region25
    $region24: #{tpu_custom_call.1} parent=1 // pred_region
      %s151 = ssub.s32 256, 256
      %152 = vsyncadd [#allocation4], %s151
      %s153 = sshll.u32 [#allocation7], 4
      %s154 = int_to_ptr.vmem [resolvable:$true] %s153
      %159 = dma.vmem_to_hbm [thread:$0]  %s154, 256, %s3, [#allocation4], 128, 128, 8
    $region25: #{tpu_custom_call.1} parent=1 // pred_fallthru
      _
    // Predicated region
    $region26: #{tpu_custom_call.1} parent=1 // pred_check
      _
    $region27: #{tpu_custom_call.1} parent=1 // pred_check_branch
      %161 = sbr.rel (0) target = $region29
    $region28: #{tpu_custom_call.1} parent=1 // pred_region
      %162 = dma.done [#allocation4], 256
    $region29: #{tpu_custom_call.1} parent=1 // pred_fallthru
      _
    %163 = vsyncpa [#allocation3], 1
    %164 = vsyncpa [#allocation6], 1
    %165 = vsyncpa [#allocation4], 1

</llo_original>
